<compile_context>
chip_gen: v6e
topology: v6e:2x2x1
jax: 0.10.0
libtpu: 0.0.40
codegen_flags: <defaults>
</compile_context>

<pallas_src>
import jax
import jax.numpy as jnp
from jax.experimental import pallas as pl
from jax.experimental.pallas import tpu as pltpu


def _round_up(x, m):
    return (x + m - 1) // m * m


def _vmem_capacity_bytes():
    """Physical per-core VMEM (v5e/v6e: 128 MiB, v7x: 64 MiB)."""
    try:
        return int(pltpu.get_tpu_info().vmem_capacity_bytes)
    except Exception:
        kind = ""
        try:
            kind = jax.devices()[0].device_kind.lower()
        except Exception:
            pass
        return 64 * 1024 * 1024 if "v7" in kind else 128 * 1024 * 1024


def _mxu_align():
    """Feature alignment for wide layers: 256 on v6e/v7x (256x256 MXU), 128 otherwise."""
    try:
        kind = jax.devices()[0].device_kind.lower()
    except Exception:
        return 128
    for tag in ("v2", "v3", "v4", "v5"):
        if tag in kind:
            return 128
    return 256


def _pad_feature(d, align):
    # Always lane-dense (multiple of 128); only bump to the native MXU width
    # when the real dim already reaches it, so tiny deep_cfr layers don't pay
    # extra HBM traffic.
    if d >= align:
        return _round_up(d, align)
    return _round_up(d, 128)


def prepare_params(weights, biases):
    """Pad / cast parameters ONCE (not on every forward call).

    weights[i]: (in_i, out_i) f32; biases[i]: (1, out_i) or (out_i,) f32.
    Returns (ws_bf16, bs_f32, dims, pdims) where
      ws_bf16[i]: (pdims[i], pdims[i+1]) bf16   (pdims[0] == real input size)
      bs_f32[i] : (1, pdims[i+1])        f32    (f32 bias: no quantization error)
    """
    n = len(weights)
    assert n == len(biases) and n >= 1
    in_size = weights[0].shape[0]
    dims = [in_size] + [w.shape[1] for w in weights]
    align = _mxu_align()
    # Input feature dim stays unpadded: x is loaded at its true width and the
    # first matmul uses the real K.
    pdims = [in_size] + [_pad_feature(d, align) for d in dims[1:]]
    ws, bs = [], []
    for i, (w, b) in enumerate(zip(weights, biases)):
        fi, fo = w.shape
        pi, po = pdims[i], pdims[i + 1]
        w_p = jnp.zeros((pi, po), jnp.bfloat16).at[:fi, :fo].set(
            w.astype(jnp.bfloat16))
        b_p = jnp.zeros((1, po), jnp.float32).at[:, :fo].set(
            jnp.reshape(b, (1, fo)).astype(jnp.float32))
        ws.append(w_p)
        bs.append(b_p)
    return ws, bs, dims, pdims


def _mlp_kernel(*refs):
    """Fused MLP forward over one batch tile.

    refs = (x_ref, w0_ref, b0_ref, ..., wN_ref, bN_ref, out_ref).
    Hidden layers apply ReLU; the final layer is linear.
    bf16 matmul inputs, f32 accumulation, f32 biases.
    """
    x_ref, o_ref = refs[0], refs[-1]
    param_refs = refs[1:-1]
    n_layers = len(param_refs) // 2

    h = x_ref[...].astype(jnp.bfloat16)            # on-chip cast (free on VPU)
    for i in range(n_layers):
        w = param_refs[2 * i][...]                 # bf16 (pin_i, pout_i)
        b = param_refs[2 * i + 1][...]             # f32  (1, pout_i)
        acc = jnp.dot(h, w, preferred_element_type=jnp.float32) + b
        if i < n_layers - 1:
            h = jnp.maximum(acc, 0.0).astype(jnp.bfloat16)
        else:
            h = acc                                # final layer stays f32
    o_ref[...] = h.astype(o_ref.dtype)


def _pick_tile_b(batch, in_size, pout_last, x_itemsize, out_itemsize, tile_b):
    if tile_b is None:
        # Target ~2 MiB of streamed (x + out) bytes per grid step so per-step
        # DMA / loop overhead (~0.35 us) is amortized; clamp to [256, 4096].
        row_bytes = in_size * x_itemsize + pout_last * out_itemsize
        tile_b = max(256, min(4096, (2 << 20) // max(row_bytes, 1)))
    # Keep >= 2 grid tiles when the batch allows it (v7x: both TensorCores busy).
    tb = min(tile_b, _round_up(pl.cdiv(batch, 2), 8))
    return max(8, _round_up(tb, 8))


def mlp_forward(x, prepared, *, tile_b=None, out_dtype=None):
    """x: (B, input_size); prepared: output of prepare_params(weights, biases)."""
    ws, bs, dims, pdims = prepared
    B, in_size = x.shape
    assert in_size == dims[0], "input feature size mismatch"
    out_size = dims[-1]
    n_layers = len(ws)

    out_dtype = x.dtype if out_dtype is None else out_dtype
    out_itemsize = jnp.dtype(out_dtype).itemsize
    x_itemsize = jnp.dtype(x.dtype).itemsize

    tb = _pick_tile_b(B, in_size, pdims[-1], x_itemsize, out_itemsize, tile_b)
    grid = (pl.cdiv(B, tb),)  # ragged last tile: extra rows masked by Pallas

    operands = [x] + [t for wb in zip(ws, bs) for t in wb]

    # VMEM budget: double-buffered x/out tiles + single-buffered resident params
    # + in-kernel f32 accumulator / bf16 activation staging + headroom.
    param_bytes = sum(int(w.size) * 2 + int(b.size) * 4 for w, b in zip(ws, bs))
    max_feat = max(pdims)
    need = (2 * tb * in_size * x_itemsize
            + 2 * tb * pdims[-1] * out_itemsize
            + param_bytes
            + tb * max_feat * (4 + 2)
            + (2 << 20))
    cap = int(_vmem_capacity_bytes() * 0.8)   # headroom: ~51 MiB on v7x, ~102 MiB on v5e/v6e
    vmem_bytes = int(min(cap, max(need, 16 << 20)))

    flops = 2 * B * sum(pdims[i] * pdims[i + 1] for i in range(n_layers))
    bytes_accessed = (int(x.size) * x_itemsize + param_bytes
                      + B * pdims[-1] * out_itemsize)
    cost = pl.CostEstimate(flops=flops, transcendentals=0,
                           bytes_accessed=bytes_accessed)

    def build(single_buffer_params):
        def param_spec(shape):
            if single_buffer_params:
                # Constant index_map -> the block is only ever DMA'd once;
                # single-buffering halves the params' VMEM footprint.
                return pl.BlockSpec(shape, lambda i: (0, 0),
                                    pipeline_mode=pl.Buffered(1))
            return pl.BlockSpec(shape, lambda i: (0, 0))

        in_specs = [pl.BlockSpec((tb, in_size), lambda i: (i, 0))]
        for li in range(n_layers):
            in_specs.append(param_spec((pdims[li], pdims[li + 1])))
            in_specs.append(param_spec((1, pdims[li + 1])))
        out_spec = pl.BlockSpec((tb, pdims[-1]), lambda i: (i, 0))

        return pl.pallas_call(
            _mlp_kernel,
            out_shape=jax.ShapeDtypeStruct((B, pdims[-1]), out_dtype),
            grid=grid,
            in_specs=in_specs,
            out_specs=out_spec,
            compiler_params=pltpu.CompilerParams(
                dimension_semantics=("parallel",),
                vmem_limit_bytes=vmem_bytes),
            cost_estimate=cost,
        )

    try:
        out = build(True)(*operands)
    except Exception:
        # pl.Buffered(1) not supported by this jax version's pallas_call
        # pipeline -> fall back to default (double-buffered) param specs.
        out = build(False)(*operands)

    return out[:, :out_size]


def init_params(key, input_size, hidden_sizes, output_size):
    """Deterministic init mirroring SonnetLinear: truncated normal, std = 1/sqrt(fan_in)."""
    sizes = [input_size] + list(hidden_sizes) + [output_size]
    weights, biases = [], []
    for i in range(len(sizes) - 1):
        fan_in, fan_out = sizes[i], sizes[i + 1]
        key, kw, kb = jax.random.split(key, 3)
        std = 1.0 / jnp.sqrt(jnp.float32(fan_in))
        w = jax.random.truncated_normal(
            kw, -2.0, 2.0, (fan_in, fan_out), jnp.float32) * std
        b = jax.random.truncated_normal(
            kb, -2.0, 2.0, (1, fan_out), jnp.float32) * std
        weights.append(w)
        biases.append(b)
    return weights, biases


def reference_mlp_f32(x, weights, biases):
    h = x
    for i, (w, b) in enumerate(zip(weights, biases)):
        h = h @ w + jnp.reshape(b, (1, -1))
        if i < len(weights) - 1:
            h = jnp.maximum(h, 0.0)
    return h


def reference_mlp_bf16(x, weights, biases):
    """Mirrors the kernel math: bf16 matmul inputs, f32 accumulation, f32 bias."""
    h = x.astype(jnp.bfloat16)
    for i, (w, b) in enumerate(zip(weights, biases)):
        acc = jnp.dot(h, w.astype(jnp.bfloat16),
                      preferred_element_type=jnp.float32)
        acc = acc + jnp.reshape(b, (1, -1)).astype(jnp.float32)
        if i < len(weights) - 1:
            h = jnp.maximum(acc, 0.0).astype(jnp.bfloat16)
        else:
            h = acc
    return h.astype(x.dtype)


if __name__ == "__main__":
    input_size = 16
    hidden_sizes = [32, 32]
    output_size = 8
    batch = 8

    key = jax.random.PRNGKey(0)
    key, kx = jax.random.split(key)
    x = jax.random.normal(kx, (batch, input_size), jnp.float32)

    weights, biases = init_params(key, input_size, hidden_sizes, output_size)
    prepared = prepare_params(weights, biases)   # pad/cast ONCE, reuse per call

    out = mlp_forward(x, prepared)
    out = jax.block_until_ready(out)

    assert out.shape == (batch, output_size)
    # Tight check against a reference that mirrors the kernel's bf16/f32 math.
    ref_bf16 = reference_mlp_bf16(x, weights, biases)
    assert jnp.allclose(out, ref_bf16, atol=2e-3, rtol=2e-3), "mismatch vs bf16 reference"
    # Looser check against the full-f32 reference (bf16 quantization budget).
    ref_f32 = reference_mlp_f32(x, weights, biases)
    assert jnp.allclose(out, ref_f32, atol=5e-2, rtol=5e-2), "mismatch vs f32 reference"

    print("KERNEL_OK")
</pallas_src>

<mosaic_0001>
module attributes {stable_mosaic.version = 11 : i64} {
  func.func @_mlp_kernel(%arg0: i32, %arg1: memref<8x16xf32, #tpu.memory_space<vmem>>, %arg2: memref<16x128xbf16, #tpu.memory_space<vmem>>, %arg3: memref<1x128xf32, #tpu.memory_space<vmem>>, %arg4: memref<128x128xbf16, #tpu.memory_space<vmem>>, %arg5: memref<1x128xf32, #tpu.memory_space<vmem>>, %arg6: memref<128x128xbf16, #tpu.memory_space<vmem>>, %arg7: memref<1x128xf32, #tpu.memory_space<vmem>>, %arg8: memref<8x128xf32, #tpu.memory_space<vmem>>) attributes {dimension_semantics = [#tpu.dimension_semantics<parallel>], iteration_bounds = array<i64: 1>, scalar_prefetch = 0 : i64, scratch_operands = 0 : i64, tpu.core_type = #tpu.core_type<tc>, window_params = [{transform_indices = @transform_0, window_bounds = array<i64: 8, 16>}, {pipeline_mode = #tpu.pipeline_mode<synchronous>, transform_indices = @transform_1, window_bounds = array<i64: 16, 128>}, {pipeline_mode = #tpu.pipeline_mode<synchronous>, transform_indices = @transform_2, window_bounds = array<i64: 1, 128>}, {pipeline_mode = #tpu.pipeline_mode<synchronous>, transform_indices = @transform_3, window_bounds = array<i64: 128, 128>}, {pipeline_mode = #tpu.pipeline_mode<synchronous>, transform_indices = @transform_4, window_bounds = array<i64: 1, 128>}, {pipeline_mode = #tpu.pipeline_mode<synchronous>, transform_indices = @transform_5, window_bounds = array<i64: 128, 128>}, {pipeline_mode = #tpu.pipeline_mode<synchronous>, transform_indices = @transform_6, window_bounds = array<i64: 1, 128>}, {transform_indices = @transform_7, window_bounds = array<i64: 8, 128>}]} {
    %c0 = arith.constant 0 : index
    %c0_0 = arith.constant 0 : index
    %0 = vector.load %arg1[%c0, %c0_0] : memref<8x16xf32, #tpu.memory_space<vmem>>, vector<8x16xf32>
    %1 = arith.truncf %0 : vector<8x16xf32> to vector<8x16xbf16>
    %c0_1 = arith.constant 0 : index
    %c0_2 = arith.constant 0 : index
    %2 = vector.load %arg2[%c0_1, %c0_2] : memref<16x128xbf16, #tpu.memory_space<vmem>>, vector<16x128xbf16>
    %c0_3 = arith.constant 0 : index
    %c0_4 = arith.constant 0 : index
    %3 = vector.load %arg3[%c0_3, %c0_4] : memref<1x128xf32, #tpu.memory_space<vmem>>, vector<1x128xf32>
    %cst = arith.constant dense<0.000000e+00> : vector<8x128xf32>
    %4 = tpu.matmul %1, %2, %cst {dimension_numbers = #tpu.dot_dimension_numbers<[1], [0], [0], [1], [0, 0, 1, 1], [], []>} : vector<8x16xbf16>, vector<16x128xbf16>, vector<8x128xf32> -> vector<8x128xf32>
    %5 = vector.broadcast %3 : vector<1x128xf32> to vector<8x128xf32>
    %6 = arith.addf %4, %5 : vector<8x128xf32>
    %cst_5 = arith.constant 0.000000e+00 : f32
    %7 = vector.broadcast %cst_5 : f32 to vector<8x128xf32>
    %8 = arith.maximumf %6, %7 : vector<8x128xf32>
    %9 = arith.truncf %8 : vector<8x128xf32> to vector<8x128xbf16>
    %c0_6 = arith.constant 0 : index
    %c0_7 = arith.constant 0 : index
    %10 = vector.load %arg4[%c0_6, %c0_7] : memref<128x128xbf16, #tpu.memory_space<vmem>>, vector<128x128xbf16>
    %c0_8 = arith.constant 0 : index
    %c0_9 = arith.constant 0 : index
    %11 = vector.load %arg5[%c0_8, %c0_9] : memref<1x128xf32, #tpu.memory_space<vmem>>, vector<1x128xf32>
    %cst_10 = arith.constant dense<0.000000e+00> : vector<8x128xf32>
    %12 = tpu.matmul %9, %10, %cst_10 {dimension_numbers = #tpu.dot_dimension_numbers<[1], [0], [0], [1], [0, 0, 1, 1], [], []>} : vector<8x128xbf16>, vector<128x128xbf16>, vector<8x128xf32> -> vector<8x128xf32>
    %13 = vector.broadcast %11 : vector<1x128xf32> to vector<8x128xf32>
    %14 = arith.addf %12, %13 : vector<8x128xf32>
    %cst_11 = arith.constant 0.000000e+00 : f32
    %15 = vector.broadcast %cst_11 : f32 to vector<8x128xf32>
    %16 = arith.maximumf %14, %15 : vector<8x128xf32>
    %17 = arith.truncf %16 : vector<8x128xf32> to vector<8x128xbf16>
    %c0_12 = arith.constant 0 : index
    %c0_13 = arith.constant 0 : index
    %18 = vector.load %arg6[%c0_12, %c0_13] : memref<128x128xbf16, #tpu.memory_space<vmem>>, vector<128x128xbf16>
    %c0_14 = arith.constant 0 : index
    %c0_15 = arith.constant 0 : index
    %19 = vector.load %arg7[%c0_14, %c0_15] : memref<1x128xf32, #tpu.memory_space<vmem>>, vector<1x128xf32>
    %cst_16 = arith.constant dense<0.000000e+00> : vector<8x128xf32>
    %20 = tpu.matmul %17, %18, %cst_16 {dimension_numbers = #tpu.dot_dimension_numbers<[1], [0], [0], [1], [0, 0, 1, 1], [], []>} : vector<8x128xbf16>, vector<128x128xbf16>, vector<8x128xf32> -> vector<8x128xf32>
    %21 = vector.broadcast %19 : vector<1x128xf32> to vector<8x128xf32>
    %22 = arith.addf %20, %21 : vector<8x128xf32>
    %c0_17 = arith.constant 0 : index
    %c0_18 = arith.constant 0 : index
    %23 = vector.load %arg8[%c0_17, %c0_18] : memref<8x128xf32, #tpu.memory_space<vmem>>, vector<8x128xf32>
    tpu.vector_store %arg8[%c0_17, %c0_18], %22 {strides = array<i32>} : memref<8x128xf32, #tpu.memory_space<vmem>>, vector<8x128xf32>,
    return
  }
  func.func @transform_0(%arg0: i32) -> (i32, i32) {
    %c0_i32 = arith.constant 0 : i32
    %c0_i32_0 = arith.constant 0 : i32
    return %arg0, %c0_i32 : i32, i32
  }
  func.func @transform_1(%arg0: i32) -> (i32, i32) {
    %c0_i32 = arith.constant 0 : i32
    %c0_i32_0 = arith.constant 0 : i32
    %c0_i32_1 = arith.constant 0 : i32
    return %c0_i32, %c0_i32_0 : i32, i32
  }
  func.func @transform_2(%arg0: i32) -> (i32, i32) {
    %c0_i32 = arith.constant 0 : i32
    %c0_i32_0 = arith.constant 0 : i32
    %c0_i32_1 = arith.constant 0 : i32
    return %c0_i32, %c0_i32_0 : i32, i32
  }
  func.func @transform_3(%arg0: i32) -> (i32, i32) {
    %c0_i32 = arith.constant 0 : i32
    %c0_i32_0 = arith.constant 0 : i32
    %c0_i32_1 = arith.constant 0 : i32
    return %c0_i32, %c0_i32_0 : i32, i32
  }
  func.func @transform_4(%arg0: i32) -> (i32, i32) {
    %c0_i32 = arith.constant 0 : i32
    %c0_i32_0 = arith.constant 0 : i32
    %c0_i32_1 = arith.constant 0 : i32
    return %c0_i32, %c0_i32_0 : i32, i32
  }
  func.func @transform_5(%arg0: i32) -> (i32, i32) {
    %c0_i32 = arith.constant 0 : i32
    %c0_i32_0 = arith.constant 0 : i32
    %c0_i32_1 = arith.constant 0 : i32
    return %c0_i32, %c0_i32_0 : i32, i32
  }
  func.func @transform_6(%arg0: i32) -> (i32, i32) {
    %c0_i32 = arith.constant 0 : i32
    %c0_i32_0 = arith.constant 0 : i32
    %c0_i32_1 = arith.constant 0 : i32
    return %c0_i32, %c0_i32_0 : i32, i32
  }
  func.func @transform_7(%arg0: i32) -> (i32, i32) {
    %c0_i32 = arith.constant 0 : i32
    %c0_i32_0 = arith.constant 0 : i32
    return %arg0, %c0_i32 : i32, i32
  }
}

module attributes {stable_mosaic.version = 11 : i64} {
  func.func @_mlp_kernel(%arg0: i32, %arg1: memref<8x16xf32, #tpu.memory_space<vmem>>, %arg2: memref<16x128xbf16, #tpu.memory_space<vmem>>, %arg3: memref<1x128xf32, #tpu.memory_space<vmem>>, %arg4: memref<128x128xbf16, #tpu.memory_space<vmem>>, %arg5: memref<1x128xf32, #tpu.memory_space<vmem>>, %arg6: memref<128x128xbf16, #tpu.memory_space<vmem>>, %arg7: memref<1x128xf32, #tpu.memory_space<vmem>>, %arg8: memref<8x128xf32, #tpu.memory_space<vmem>>) attributes {dimension_semantics = [#tpu.dimension_semantics<parallel>], iteration_bounds = array<i64: 1>, scalar_prefetch = 0 : i64, scratch_operands = 0 : i64, tpu.core_type = #tpu.core_type<tc>, window_params = [{transform_indices = @transform_0, window_bounds = array<i64: 8, 16>}, {pipeline_mode = #tpu.pipeline_mode<synchronous>, transform_indices = @transform_1, window_bounds = array<i64: 16, 128>}, {pipeline_mode = #tpu.pipeline_mode<synchronous>, transform_indices = @transform_2, window_bounds = array<i64: 1, 128>}, {pipeline_mode = #tpu.pipeline_mode<synchronous>, transform_indices = @transform_3, window_bounds = array<i64: 128, 128>}, {pipeline_mode = #tpu.pipeline_mode<synchronous>, transform_indices = @transform_4, window_bounds = array<i64: 1, 128>}, {pipeline_mode = #tpu.pipeline_mode<synchronous>, transform_indices = @transform_5, window_bounds = array<i64: 128, 128>}, {pipeline_mode = #tpu.pipeline_mode<synchronous>, transform_indices = @transform_6, window_bounds = array<i64: 1, 128>}, {transform_indices = @transform_7, window_bounds = array<i64: 8, 128>}]} {
    %c0 = arith.constant 0 : index
    %c0_0 = arith.constant 0 : index
    %0 = vector.load %arg1[%c0, %c0_0] : memref<8x16xf32, #tpu.memory_space<vmem>>, vector<8x16xf32>
    %1 = arith.truncf %0 : vector<8x16xf32> to vector<8x16xbf16>
    %c0_1 = arith.constant 0 : index
    %c0_2 = arith.constant 0 : index
    %2 = vector.load %arg2[%c0_1, %c0_2] : memref<16x128xbf16, #tpu.memory_space<vmem>>, vector<16x128xbf16>
    %c0_3 = arith.constant 0 : index
    %c0_4 = arith.constant 0 : index
    %3 = vector.load %arg3[%c0_3, %c0_4] : memref<1x128xf32, #tpu.memory_space<vmem>>, vector<1x128xf32>
    %cst = arith.constant dense<0.000000e+00> : vector<8x128xf32>
    %4 = tpu.matmul %1, %2, %cst {dimension_numbers = #tpu.dot_dimension_numbers<[1], [0], [0], [1], [0, 0, 1, 1], [], []>} : vector<8x16xbf16>, vector<16x128xbf16>, vector<8x128xf32> -> vector<8x128xf32>
    %5 = vector.broadcast %3 : vector<1x128xf32> to vector<8x128xf32>
    %6 = arith.addf %4, %5 : vector<8x128xf32>
    %cst_5 = arith.constant 0.000000e+00 : f32
    %7 = vector.broadcast %cst_5 : f32 to vector<8x128xf32>
    %8 = arith.maximumf %6, %7 : vector<8x128xf32>
    %9 = arith.truncf %8 : vector<8x128xf32> to vector<8x128xbf16>
    %c0_6 = arith.constant 0 : index
    %c0_7 = arith.constant 0 : index
    %10 = vector.load %arg4[%c0_6, %c0_7] : memref<128x128xbf16, #tpu.memory_space<vmem>>, vector<128x128xbf16>
    %c0_8 = arith.constant 0 : index
    %c0_9 = arith.constant 0 : index
    %11 = vector.load %arg5[%c0_8, %c0_9] : memref<1x128xf32, #tpu.memory_space<vmem>>, vector<1x128xf32>
    %cst_10 = arith.constant dense<0.000000e+00> : vector<8x128xf32>
    %12 = tpu.matmul %9, %10, %cst_10 {dimension_numbers = #tpu.dot_dimension_numbers<[1], [0], [0], [1], [0, 0, 1, 1], [], []>} : vector<8x128xbf16>, vector<128x128xbf16>, vector<8x128xf32> -> vector<8x128xf32>
    %13 = vector.broadcast %11 : vector<1x128xf32> to vector<8x128xf32>
    %14 = arith.addf %12, %13 : vector<8x128xf32>
    %cst_11 = arith.constant 0.000000e+00 : f32
    %15 = vector.broadcast %cst_11 : f32 to vector<8x128xf32>
    %16 = arith.maximumf %14, %15 : vector<8x128xf32>
    %17 = arith.truncf %16 : vector<8x128xf32> to vector<8x128xbf16>
    %c0_12 = arith.constant 0 : index
    %c0_13 = arith.constant 0 : index
    %18 = vector.load %arg6[%c0_12, %c0_13] : memref<128x128xbf16, #tpu.memory_space<vmem>>, vector<128x128xbf16>
    %c0_14 = arith.constant 0 : index
    %c0_15 = arith.constant 0 : index
    %19 = vector.load %arg7[%c0_14, %c0_15] : memref<1x128xf32, #tpu.memory_space<vmem>>, vector<1x128xf32>
    %cst_16 = arith.constant dense<0.000000e+00> : vector<8x128xf32>
    %20 = tpu.matmul %17, %18, %cst_16 {dimension_numbers = #tpu.dot_dimension_numbers<[1], [0], [0], [1], [0, 0, 1, 1], [], []>} : vector<8x128xbf16>, vector<128x128xbf16>, vector<8x128xf32> -> vector<8x128xf32>
    %21 = vector.broadcast %19 : vector<1x128xf32> to vector<8x128xf32>
    %22 = arith.addf %20, %21 : vector<8x128xf32>
    %c0_17 = arith.constant 0 : index
    %c0_18 = arith.constant 0 : index
    %23 = vector.load %arg8[%c0_17, %c0_18] : memref<8x128xf32, #tpu.memory_space<vmem>>, vector<8x128xf32>
    tpu.vector_store %arg8[%c0_17, %c0_18], %22 {strides = array<i32>} : memref<8x128xf32, #tpu.memory_space<vmem>>, vector<8x128xf32>,
    return
  }
  func.func @transform_0(%arg0: i32) -> (i32, i32) {
    %c0_i32 = arith.constant 0 : i32
    %c0_i32_0 = arith.constant 0 : i32
    return %arg0, %c0_i32 : i32, i32
  }
  func.func @transform_1(%arg0: i32) -> (i32, i32) {
    %c0_i32 = arith.constant 0 : i32
    %c0_i32_0 = arith.constant 0 : i32
    %c0_i32_1 = arith.constant 0 : i32
    return %c0_i32, %c0_i32_0 : i32, i32
  }
  func.func @transform_2(%arg0: i32) -> (i32, i32) {
    %c0_i32 = arith.constant 0 : i32
    %c0_i32_0 = arith.constant 0 : i32
    %c0_i32_1 = arith.constant 0 : i32
    return %c0_i32, %c0_i32_0 : i32, i32
  }
  func.func @transform_3(%arg0: i32) -> (i32, i32) {
    %c0_i32 = arith.constant 0 : i32
    %c0_i32_0 = arith.constant 0 : i32
    %c0_i32_1 = arith.constant 0 : i32
    return %c0_i32, %c0_i32_0 : i32, i32
  }
  func.func @transform_4(%arg0: i32) -> (i32, i32) {
    %c0_i32 = arith.constant 0 : i32
    %c0_i32_0 = arith.constant 0 : i32
    %c0_i32_1 = arith.constant 0 : i32
    return %c0_i32, %c0_i32_0 : i32, i32
  }
  func.func @transform_5(%arg0: i32) -> (i32, i32) {
    %c0_i32 = arith.constant 0 : i32
    %c0_i32_0 = arith.constant 0 : i32
    %c0_i32_1 = arith.constant 0 : i32
    return %c0_i32, %c0_i32_0 : i32, i32
  }
  func.func @transform_6(%arg0: i32) -> (i32, i32) {
    %c0_i32 = arith.constant 0 : i32
    %c0_i32_0 = arith.constant 0 : i32
    %c0_i32_1 = arith.constant 0 : i32
    return %c0_i32, %c0_i32_0 : i32, i32
  }
  func.func @transform_7(%arg0: i32) -> (i32, i32) {
    %c0_i32 = arith.constant 0 : i32
    %c0_i32_0 = arith.constant 0 : i32
    return %arg0, %c0_i32 : i32, i32
  }
}

</mosaic_0001>

<llo_original>
// kernel: tpu_custom_call.1
$region0: #{tpu_custom_call.1}
  #allocation0 [shape = 'u32[]', space=smem, size = 0x4, offset = 0x4, fixed_abs, tag = 'smem constant byte address 0x4 - core index']
  #allocation1 [shape = 'u32[144,128]{1,0:T(1,128)}', space=vmem, size = 0x12000, scoped, tag = 'internal scratch']
  %s0 = inlined_call_operand.hbm [shape: f32[8,16], index: 0, kind: input, shape index: {}]
  %s1 = inlined_call_operand.hbm [shape: bf16[16,128], index: 1, kind: input, shape index: {}]
  %s2 = inlined_call_operand.vmem [shape: f32[1,128], index: 2, kind: input, shape index: {}]
  %s3 = inlined_call_operand.hbm [shape: bf16[128,128], index: 3, kind: input, shape index: {}]
  %s4 = inlined_call_operand.vmem [shape: f32[1,128], index: 4, kind: input, shape index: {}]
  %s5 = inlined_call_operand.hbm [shape: bf16[128,128], index: 5, kind: input, shape index: {}]
  %s6 = inlined_call_operand.vmem [shape: f32[1,128], index: 6, kind: input, shape index: {}]
  %s7 = inlined_call_operand.hbm [shape: f32[8,128], index: 7, kind: output, shape index: {}]
  %s8 = sld [smem:[#allocation0]]
  $region54: #{tpu_custom_call.1} parent=0
    _
  %s10 = ssub.s32 1, %s8
  %s11 = scalar_select 0, %s10, %s8
  $region1: #{tpu_custom_call.1} parent=0
    #allocation2 [shape = 'u8[4096]{0}', space=vmem, size = 0x1000, scoped, tag = 'input window, operand 0, single buffered']
    #allocation3 [shape = 's32[1]{0}', space=sflag, size = 0x4, scoped, tag = 'scoped memory for tpu_custom_call.1']
    #allocation4 [shape = 's32[1]{0}', space=sflag, size = 0x4, scoped, tag = 'scoped memory for tpu_custom_call.1']
    #allocation5 [shape = 'u8[4096]{0}', space=vmem, size = 0x1000, scoped, tag = 'input window, operand 1, single buffered']
    #allocation6 [shape = 's32[1]{0}', space=sflag, size = 0x4, scoped, tag = 'scoped memory for tpu_custom_call.1']
    #allocation7 [shape = 'u8[32768]{0}', space=vmem, size = 0x8000, scoped, tag = 'input window, operand 3, single buffered']
    #allocation8 [shape = 'u8[32768]{0}', space=vmem, size = 0x8000, scoped, tag = 'input window, operand 5, single buffered']
    #allocation9 [shape = 's32[1]{0}', space=sflag, size = 0x4, scoped, tag = 'scoped memory for tpu_custom_call.1']
    #allocation10 [shape = 'u8[4096]{0}', space=vmem, size = 0x1000, scoped, tag = 'output window, operand 0, single buffered']
    %12 = vsyncpa [#allocation3], 0
    %13 = vsyncpa [#allocation6], 0
    %14 = vsyncpa [#allocation9], 0
    %15 = vsyncpa [#allocation4], 0
    // Predicated region
    $region2: #{tpu_custom_call.1} parent=1 // pred_check
      _
    $region3: #{tpu_custom_call.1} parent=1 // pred_check_branch
      %17 = sbr.rel (0) target = $region5
    $region4: #{tpu_custom_call.1} parent=1 // pred_region
      %s19 = ssub.s32 128, 128
      %20 = vsyncadd [#allocation3], %s19
      %s22 = sshll.u32 [#allocation2], 4
      %s23 = int_to_ptr.vmem [resolvable:$true] %s22
      %25 = dma.hbm_to_vmem [thread:$0]  %s0, 128, %s23, [#allocation3]
    $region5: #{tpu_custom_call.1} parent=1 // pred_fallthru
      _
    // Predicated region
    $region6: #{tpu_custom_call.1} parent=1 // pred_check
      _
    $region7: #{tpu_custom_call.1} parent=1 // pred_check_branch
      %27 = sbr.rel (0) target = $region9
    $region8: #{tpu_custom_call.1} parent=1 // pred_region
      %s29 = ssub.s32 128, 128
      %30 = vsyncadd [#allocation6], %s29
      %s31 = sshll.u32 [#allocation5], 4
      %s32 = int_to_ptr.vmem [resolvable:$true] %s31
      %37 = dma.hbm_to_vmem [thread:$0]  %s1, 128, %s32, [#allocation6], 64, 64, 4
    $region9: #{tpu_custom_call.1} parent=1 // pred_fallthru
      _
    // Predicated region
    $region10: #{tpu_custom_call.1} parent=1 // pred_check
      _
    $region11: #{tpu_custom_call.1} parent=1 // pred_check_branch
      %39 = sbr.rel (0) target = $region13
    $region12: #{tpu_custom_call.1} parent=1 // pred_region
      _
    $region13: #{tpu_custom_call.1} parent=1 // pred_fallthru
      _
    // Predicated region
    $region14: #{tpu_custom_call.1} parent=1 // pred_check
      _
    $region15: #{tpu_custom_call.1} parent=1 // pred_check_branch
      %41 = sbr.rel (0) target = $region17
    $region16: #{tpu_custom_call.1} parent=1 // pred_region
      %s43 = ssub.s32 1024, 1024
      %44 = vsyncadd [#allocation6], %s43
      %s45 = sshll.u32 [#allocation7], 4
      %s46 = int_to_ptr.vmem [resolvable:$true] %s45
      %51 = dma.hbm_to_vmem [thread:$0]  %s3, 1024, %s46, [#allocation6], 64, 64, 4
    $region17: #{tpu_custom_call.1} parent=1 // pred_fallthru
      _
    // Predicated region
    $region18: #{tpu_custom_call.1} parent=1 // pred_check
      _
    $region19: #{tpu_custom_call.1} parent=1 // pred_check_branch
      %53 = sbr.rel (0) target = $region21
    $region20: #{tpu_custom_call.1} parent=1 // pred_region
      _
    $region21: #{tpu_custom_call.1} parent=1 // pred_fallthru
      _
    // Predicated region
    $region22: #{tpu_custom_call.1} parent=1 // pred_check
      _
    $region23: #{tpu_custom_call.1} parent=1 // pred_check_branch
      %55 = sbr.rel (0) target = $region25
    $region24: #{tpu_custom_call.1} parent=1 // pred_region
      %s57 = ssub.s32 1024, 1024
      %58 = vsyncadd [#allocation9], %s57
      %s59 = sshll.u32 [#allocation8], 4
      %s60 = int_to_ptr.vmem [resolvable:$true] %s59
      %65 = dma.hbm_to_vmem [thread:$0]  %s5, 1024, %s60, [#allocation9], 64, 64, 4
    $region25: #{tpu_custom_call.1} parent=1 // pred_fallthru
      _
    // Predicated region
    $region26: #{tpu_custom_call.1} parent=1 // pred_check
      _
    $region27: #{tpu_custom_call.1} parent=1 // pred_check_branch
      %67 = sbr.rel (0) target = $region29
    $region28: #{tpu_custom_call.1} parent=1 // pred_region
      _
    $region29: #{tpu_custom_call.1} parent=1 // pred_fallthru
      _
    // Predicated region
    $region30: #{tpu_custom_call.1} parent=1 // pred_check
      _
    $region31: #{tpu_custom_call.1} parent=1 // pred_check_branch
      %69 = sbr.rel (0) target = $region33
    $region32: #{tpu_custom_call.1} parent=1 // pred_region
      %70 = dma.done [#allocation3], 128
    $region33: #{tpu_custom_call.1} parent=1 // pred_fallthru
      _
    // Predicated region
    $region34: #{tpu_custom_call.1} parent=1 // pred_check
      _
    $region35: #{tpu_custom_call.1} parent=1 // pred_check_branch
      %72 = sbr.rel (0) target = $region37
    $region36: #{tpu_custom_call.1} parent=1 // pred_region
      %73 = dma.done [#allocation6], 128
    $region37: #{tpu_custom_call.1} parent=1 // pred_fallthru
      _
    // Predicated region
    $region38: #{tpu_custom_call.1} parent=1 // pred_check
      _
    $region39: #{tpu_custom_call.1} parent=1 // pred_check_branch
      %75 = sbr.rel (0) target = $region41
    $region40: #{tpu_custom_call.1} parent=1 // pred_region
      %76 = dma.done [#allocation6], 1024
    $region41: #{tpu_custom_call.1} parent=1 // pred_fallthru
      _
    // Predicated region
    $region42: #{tpu_custom_call.1} parent=1 // pred_check
      _
    $region43: #{tpu_custom_call.1} parent=1 // pred_check_branch
      %78 = sbr.rel (0) target = $region45
    $region44: #{tpu_custom_call.1} parent=1 // pred_region
      %79 = dma.done [#allocation9], 1024
    $region45: #{tpu_custom_call.1} parent=1 // pred_fallthru
      _
    %v81 = vld [vmem:[#allocation2] sm:$0xff]
    %v82 = vpack.c.bf16 %v81, %v81
    %v83 = vld [vmem:[#allocation5] sm:$0xf]
    %v84 = vld [vmem:[#allocation5 + $0x4] sm:$0xf]
    %v85 = vld [vmem:[%s2] sm:$0x1]
    %v87 = vlaneseq
    %v88 = vshrl.u32 %v87, 7
    %v89 = vsub.s32 0, %v88
    %v90 = vrot.slane %v85, %v89
    %v94 = vunpack.c.l.b16 %v83
    %v95 = vunpack.c.l.b16 %v84
    %v96 = vpack.c.b16 %v95, %v94
    %vm98 = vcmask 130048
    %v100 = vsel %vm98, %v82, 0
    %102 = vmatprep.subr.bf16.mxu0 0
    %103 = vmatpush1.bf16.msra.mxu0 0
    %104 = vmatprep.subr.bf16.mxu0 0
    %105 = vmatpush1.bf16.msra.mxu0 0
    %106 = vmatprep.subr.bf16.mxu0 0
    %107 = vmatpush1.bf16.msra.mxu0 0
    %108 = vmatprep.subr.bf16.mxu0 0
    %109 = vmatpush1.bf16.msra.mxu0 0
    %110 = vmatprep.subr.bf16.mxu0 0
    %111 = vmatpush1.bf16.msra.mxu0 0
    %112 = vmatprep.subr.bf16.mxu0 0
    %113 = vmatpush1.bf16.msra.mxu0 0
    %114 = vmatprep.subr.bf16.mxu0 0
    %115 = vmatpush1.bf16.msra.mxu0 0
    %116 = vmatprep.subr.bf16.mxu0 0
    %117 = vmatpush1.bf16.msra.mxu0 %v96
    %118 = vmatprep.subr.bf16.mxu0 0
    %119 = vmatpush2.bf16.msra.mxu0 0
    %120 = vmatprep.subr.bf16.mxu0 0
    %121 = vmatpush2.bf16.msra.mxu0 0
    %122 = vmatprep.subr.bf16.mxu0 0
    %123 = vmatpush2.bf16.msra.mxu0 0
    %124 = vmatprep.subr.bf16.mxu0 0
    %125 = vmatpush2.bf16.msra.mxu0 0
    %126 = vmatprep.subr.bf16.mxu0 0
    %127 = vmatpush2.bf16.msra.mxu0 0
    %128 = vmatprep.subr.bf16.mxu0 0
    %129 = vmatpush2.bf16.msra.mxu0 0
    %130 = vmatprep.subr.bf16.mxu0 0
    %131 = vmatpush2.bf16.msra.mxu0 0
    %132 = vmatprep.subr.bf16.mxu0 0
    %133 = vmatpush2.bf16.msra.mxu0 0
    %134 = vmatprep.mubr.bf16.mxu0 0
    %135 = vmatmul.mubr.bf16.gmra.mxu0 %v100
    %v136 = vpop.f32.mrf.mxu0
    %v137 = vadd.f32 %v90, %v136
    %v138 = vpop.f32.mrf.mxu0
    %v139 = vpop.f32.mrf.mxu0
    %v140 = vpop.f32.mrf.mxu0
    %141 = vdwg.mxu0
    %v142 = vmax.f32 %v137, 0.0
    %v143 = vpack.c.bf16 %v142, %v142
    %v144 = vld [vmem:[#allocation7] sm:$0xf]
    %v145 = vld [vmem:[#allocation7 + $0x4] sm:$0xf]
    %v146 = vld [vmem:[#allocation7 + $0x8] sm:$0xf]
    %v147 = vld [vmem:[#allocation7 + $0xc] sm:$0xf]
    %v148 = vld [vmem:[#allocation7 + $0x10] sm:$0xf]
    %v149 = vld [vmem:[#allocation7 + $0x14] sm:$0xf]
    %v150 = vld [vmem:[#allocation7 + $0x18] sm:$0xf]
    %v151 = vld [vmem:[#allocation7 + $0x1c] sm:$0xf]
    %v152 = vld [vmem:[#allocation7 + $0x20] sm:$0xf]
    %v153 = vld [vmem:[#allocation7 + $0x24] sm:$0xf]
    %v154 = vld [vmem:[#allocation7 + $0x28] sm:$0xf]
    %v155 = vld [vmem:[#allocation7 + $0x2c] sm:$0xf]
    %v156 = vld [vmem:[#allocation7 + $0x30] sm:$0xf]
    %v157 = vld [vmem:[#allocation7 + $0x34] sm:$0xf]
    %v158 = vld [vmem:[#allocation7 + $0x38] sm:$0xf]
    %v159 = vld [vmem:[#allocation7 + $0x3c] sm:$0xf]
    %v160 = vld [vmem:[%s4] sm:$0x1]
    %v162 = vlaneseq
    %v163 = vshrl.u32 %v162, 7
    %v164 = vsub.s32 0, %v163
    %v165 = vrot.slane %v160, %v164
    %v183 = vunpack.c.l.b16 %v144
    %v184 = vunpack.c.l.b16 %v145
    %v185 = vunpack.c.l.b16 %v146
    %v186 = vunpack.c.l.b16 %v147
    %v187 = vunpack.c.l.b16 %v148
    %v188 = vunpack.c.l.b16 %v149
    %v189 = vunpack.c.l.b16 %v150
    %v190 = vunpack.c.l.b16 %v151
    %v191 = vunpack.c.l.b16 %v152
    %v192 = vunpack.c.l.b16 %v153
    %v193 = vunpack.c.l.b16 %v154
    %v194 = vunpack.c.l.b16 %v155
    %v195 = vunpack.c.l.b16 %v156
    %v196 = vunpack.c.l.b16 %v157
    %v197 = vunpack.c.l.b16 %v158
    %v198 = vunpack.c.l.b16 %v159
    %v199 = vpack.c.b16 %v184, %v183
    %v200 = vpack.c.b16 %v186, %v185
    %v201 = vpack.c.b16 %v188, %v187
    %v202 = vpack.c.b16 %v190, %v189
    %v203 = vpack.c.b16 %v192, %v191
    %v204 = vpack.c.b16 %v194, %v193
    %v205 = vpack.c.b16 %v196, %v195
    %v206 = vpack.c.b16 %v198, %v197
    %215 = vmatprep.subr.bf16.mxu0 0
    %216 = vmatpush1.bf16.msra.mxu0 %v206
    %217 = vmatprep.subr.bf16.mxu0 0
    %218 = vmatpush1.bf16.msra.mxu0 %v205
    %219 = vmatprep.subr.bf16.mxu0 0
    %220 = vmatpush1.bf16.msra.mxu0 %v204
    %221 = vmatprep.subr.bf16.mxu0 0
    %222 = vmatpush1.bf16.msra.mxu0 %v203
    %223 = vmatprep.subr.bf16.mxu0 0
    %224 = vmatpush1.bf16.msra.mxu0 %v202
    %225 = vmatprep.subr.bf16.mxu0 0
    %226 = vmatpush1.bf16.msra.mxu0 %v201
    %227 = vmatprep.subr.bf16.mxu0 0
    %228 = vmatpush1.bf16.msra.mxu0 %v200
    %229 = vmatprep.subr.bf16.mxu0 0
    %230 = vmatpush1.bf16.msra.mxu0 %v199
    %231 = vmatprep.subr.bf16.mxu0 0
    %232 = vmatpush2.bf16.msra.mxu0 0
    %233 = vmatprep.subr.bf16.mxu0 0
    %234 = vmatpush2.bf16.msra.mxu0 0
    %235 = vmatprep.subr.bf16.mxu0 0
    %236 = vmatpush2.bf16.msra.mxu0 0
    %237 = vmatprep.subr.bf16.mxu0 0
    %238 = vmatpush2.bf16.msra.mxu0 0
    %239 = vmatprep.subr.bf16.mxu0 0
    %240 = vmatpush2.bf16.msra.mxu0 0
    %241 = vmatprep.subr.bf16.mxu0 0
    %242 = vmatpush2.bf16.msra.mxu0 0
    %243 = vmatprep.subr.bf16.mxu0 0
    %244 = vmatpush2.bf16.msra.mxu0 0
    %245 = vmatprep.subr.bf16.mxu0 0
    %246 = vmatpush2.bf16.msra.mxu0 0
    %247 = vmatprep.mubr.bf16.mxu0 0
    %248 = vmatmul.mubr.bf16.gmra.mxu0 %v143
    %v249 = vpop.f32.mrf.mxu0
    %v250 = vadd.f32 %v165, %v249
    %v251 = vpop.f32.mrf.mxu0
    %v252 = vpop.f32.mrf.mxu0
    %v253 = vpop.f32.mrf.mxu0
    %254 = vdwg.mxu0
    %v255 = vmax.f32 %v250, 0.0
    %v256 = vpack.c.bf16 %v255, %v255
    %v257 = vld [vmem:[#allocation8] sm:$0xf]
    %v258 = vld [vmem:[#allocation8 + $0x4] sm:$0xf]
    %v259 = vld [vmem:[#allocation8 + $0x8] sm:$0xf]
    %v260 = vld [vmem:[#allocation8 + $0xc] sm:$0xf]
    %v261 = vld [vmem:[#allocation8 + $0x10] sm:$0xf]
    %v262 = vld [vmem:[#allocation8 + $0x14] sm:$0xf]
    %v263 = vld [vmem:[#allocation8 + $0x18] sm:$0xf]
    %v264 = vld [vmem:[#allocation8 + $0x1c] sm:$0xf]
    %v265 = vld [vmem:[#allocation8 + $0x20] sm:$0xf]
    %v266 = vld [vmem:[#allocation8 + $0x24] sm:$0xf]
    %v267 = vld [vmem:[#allocation8 + $0x28] sm:$0xf]
    %v268 = vld [vmem:[#allocation8 + $0x2c] sm:$0xf]
    %v269 = vld [vmem:[#allocation8 + $0x30] sm:$0xf]
    %v270 = vld [vmem:[#allocation8 + $0x34] sm:$0xf]
    %v271 = vld [vmem:[#allocation8 + $0x38] sm:$0xf]
    %v272 = vld [vmem:[#allocation8 + $0x3c] sm:$0xf]
    %v273 = vld [vmem:[%s6] sm:$0x1]
    %v275 = vlaneseq
    %v276 = vshrl.u32 %v275, 7
    %v277 = vsub.s32 0, %v276
    %v278 = vrot.slane %v273, %v277
    %v296 = vunpack.c.l.b16 %v257
    %v297 = vunpack.c.l.b16 %v258
    %v298 = vunpack.c.l.b16 %v259
    %v299 = vunpack.c.l.b16 %v260
    %v300 = vunpack.c.l.b16 %v261
    %v301 = vunpack.c.l.b16 %v262
    %v302 = vunpack.c.l.b16 %v263
    %v303 = vunpack.c.l.b16 %v264
    %v304 = vunpack.c.l.b16 %v265
    %v305 = vunpack.c.l.b16 %v266
    %v306 = vunpack.c.l.b16 %v267
    %v307 = vunpack.c.l.b16 %v268
    %v308 = vunpack.c.l.b16 %v269
    %v309 = vunpack.c.l.b16 %v270
    %v310 = vunpack.c.l.b16 %v271
    %v311 = vunpack.c.l.b16 %v272
    %v312 = vpack.c.b16 %v297, %v296
    %v313 = vpack.c.b16 %v299, %v298
    %v314 = vpack.c.b16 %v301, %v300
    %v315 = vpack.c.b16 %v303, %v302
    %v316 = vpack.c.b16 %v305, %v304
    %v317 = vpack.c.b16 %v307, %v306
    %v318 = vpack.c.b16 %v309, %v308
    %v319 = vpack.c.b16 %v311, %v310
    %328 = vmatprep.subr.bf16.mxu0 0
    %329 = vmatpush1.bf16.msra.mxu0 %v319
    %330 = vmatprep.subr.bf16.mxu0 0
    %331 = vmatpush1.bf16.msra.mxu0 %v318
    %332 = vmatprep.subr.bf16.mxu0 0
    %333 = vmatpush1.bf16.msra.mxu0 %v317
    %334 = vmatprep.subr.bf16.mxu0 0
    %335 = vmatpush1.bf16.msra.mxu0 %v316
    %336 = vmatprep.subr.bf16.mxu0 0
    %337 = vmatpush1.bf16.msra.mxu0 %v315
    %338 = vmatprep.subr.bf16.mxu0 0
    %339 = vmatpush1.bf16.msra.mxu0 %v314
    %340 = vmatprep.subr.bf16.mxu0 0
    %341 = vmatpush1.bf16.msra.mxu0 %v313
    %342 = vmatprep.subr.bf16.mxu0 0
    %343 = vmatpush1.bf16.msra.mxu0 %v312
    %344 = vmatprep.subr.bf16.mxu0 0
    %345 = vmatpush2.bf16.msra.mxu0 0
    %346 = vmatprep.subr.bf16.mxu0 0
    %347 = vmatpush2.bf16.msra.mxu0 0
    %348 = vmatprep.subr.bf16.mxu0 0
    %349 = vmatpush2.bf16.msra.mxu0 0
    %350 = vmatprep.subr.bf16.mxu0 0
    %351 = vmatpush2.bf16.msra.mxu0 0
    %352 = vmatprep.subr.bf16.mxu0 0
    %353 = vmatpush2.bf16.msra.mxu0 0
    %354 = vmatprep.subr.bf16.mxu0 0
    %355 = vmatpush2.bf16.msra.mxu0 0
    %356 = vmatprep.subr.bf16.mxu0 0
    %357 = vmatpush2.bf16.msra.mxu0 0
    %358 = vmatprep.subr.bf16.mxu0 0
    %359 = vmatpush2.bf16.msra.mxu0 0
    %360 = vmatprep.mubr.bf16.mxu0 0
    %361 = vmatmul.mubr.bf16.gmra.mxu0 %v256
    %v362 = vpop.f32.mrf.mxu0
    %v363 = vadd.f32 %v278, %v362
    %v364 = vpop.f32.mrf.mxu0
    %v365 = vpop.f32.mrf.mxu0
    %v366 = vpop.f32.mrf.mxu0
    %367 = vdwg.mxu0
    %368 = vst [vmem:[#allocation10] sm:$0xff] %v363
    // Predicated region
    $region46: #{tpu_custom_call.1} parent=1 // pred_check
      _
    $region47: #{tpu_custom_call.1} parent=1 // pred_check_branch
      %370 = sbr.rel (0) target = $region49
    $region48: #{tpu_custom_call.1} parent=1 // pred_region
      %s372 = ssub.s32 128, 128
      %373 = vsyncadd [#allocation4], %s372
      %s375 = sshll.u32 [#allocation10], 4
      %s376 = int_to_ptr.vmem [resolvable:$true] %s375
      %378 = dma.vmem_to_hbm [thread:$0]  %s376, 128, %s7, [#allocation4]
    $region49: #{tpu_custom_call.1} parent=1 // pred_fallthru
      _
    // Predicated region
    $region50: #{tpu_custom_call.1} parent=1 // pred_check
      _
    $region51: #{tpu_custom_call.1} parent=1 // pred_check_branch
      %380 = sbr.rel (0) target = $region53
    $region52: #{tpu_custom_call.1} parent=1 // pred_region
      %381 = dma.done [#allocation4], 128
    $region53: #{tpu_custom_call.1} parent=1 // pred_fallthru
      _
    %382 = vsyncpa [#allocation3], 1
    %383 = vsyncpa [#allocation6], 1
    %384 = vsyncpa [#allocation9], 1
    %385 = vsyncpa [#allocation4], 1

// kernel: tpu_custom_call.1
$region0: #{tpu_custom_call.1}
  #allocation0 [shape = 'u32[]', space=smem, size = 0x4, offset = 0x4, fixed_abs, tag = 'smem constant byte address 0x4 - core index']
  #allocation1 [shape = 'u32[144,128]{1,0:T(1,128)}', space=vmem, size = 0x12000, scoped, tag = 'internal scratch']
  %s0 = inlined_call_operand.hbm [shape: f32[8,16], index: 0, kind: input, shape index: {}]
  %s1 = inlined_call_operand.hbm [shape: bf16[16,128], index: 1, kind: input, shape index: {}]
  %s2 = inlined_call_operand.vmem [shape: f32[1,128], index: 2, kind: input, shape index: {}]
  %s3 = inlined_call_operand.hbm [shape: bf16[128,128], index: 3, kind: input, shape index: {}]
  %s4 = inlined_call_operand.vmem [shape: f32[1,128], index: 4, kind: input, shape index: {}]
  %s5 = inlined_call_operand.hbm [shape: bf16[128,128], index: 5, kind: input, shape index: {}]
  %s6 = inlined_call_operand.vmem [shape: f32[1,128], index: 6, kind: input, shape index: {}]
  %s7 = inlined_call_operand.hbm [shape: f32[8,128], index: 7, kind: output, shape index: {}]
  %s8 = sld [smem:[#allocation0]]
  $region54: #{tpu_custom_call.1} parent=0
    _
  %s10 = ssub.s32 1, %s8
  %s11 = scalar_select 0, %s10, %s8
  $region1: #{tpu_custom_call.1} parent=0
    #allocation2 [shape = 'u8[4096]{0}', space=vmem, size = 0x1000, scoped, tag = 'input window, operand 0, single buffered']
    #allocation3 [shape = 's32[1]{0}', space=sflag, size = 0x4, scoped, tag = 'scoped memory for tpu_custom_call.1']
    #allocation4 [shape = 's32[1]{0}', space=sflag, size = 0x4, scoped, tag = 'scoped memory for tpu_custom_call.1']
    #allocation5 [shape = 'u8[4096]{0}', space=vmem, size = 0x1000, scoped, tag = 'input window, operand 1, single buffered']
    #allocation6 [shape = 's32[1]{0}', space=sflag, size = 0x4, scoped, tag = 'scoped memory for tpu_custom_call.1']
    #allocation7 [shape = 'u8[32768]{0}', space=vmem, size = 0x8000, scoped, tag = 'input window, operand 3, single buffered']
    #allocation8 [shape = 'u8[32768]{0}', space=vmem, size = 0x8000, scoped, tag = 'input window, operand 5, single buffered']
    #allocation9 [shape = 's32[1]{0}', space=sflag, size = 0x4, scoped, tag = 'scoped memory for tpu_custom_call.1']
    #allocation10 [shape = 'u8[4096]{0}', space=vmem, size = 0x1000, scoped, tag = 'output window, operand 0, single buffered']
    %12 = vsyncpa [#allocation3], 0
    %13 = vsyncpa [#allocation6], 0
    %14 = vsyncpa [#allocation9], 0
    %15 = vsyncpa [#allocation4], 0
    // Predicated region
    $region2: #{tpu_custom_call.1} parent=1 // pred_check
      _
    $region3: #{tpu_custom_call.1} parent=1 // pred_check_branch
      %17 = sbr.rel (0) target = $region5
    $region4: #{tpu_custom_call.1} parent=1 // pred_region
      %s19 = ssub.s32 128, 128
      %20 = vsyncadd [#allocation3], %s19
      %s22 = sshll.u32 [#allocation2], 4
      %s23 = int_to_ptr.vmem [resolvable:$true] %s22
      %25 = dma.hbm_to_vmem [thread:$0]  %s0, 128, %s23, [#allocation3]
    $region5: #{tpu_custom_call.1} parent=1 // pred_fallthru
      _
    // Predicated region
    $region6: #{tpu_custom_call.1} parent=1 // pred_check
      _
    $region7: #{tpu_custom_call.1} parent=1 // pred_check_branch
      %27 = sbr.rel (0) target = $region9
    $region8: #{tpu_custom_call.1} parent=1 // pred_region
      %s29 = ssub.s32 128, 128
      %30 = vsyncadd [#allocation6], %s29
      %s31 = sshll.u32 [#allocation5], 4
      %s32 = int_to_ptr.vmem [resolvable:$true] %s31
      %37 = dma.hbm_to_vmem [thread:$0]  %s1, 128, %s32, [#allocation6], 64, 64, 4
    $region9: #{tpu_custom_call.1} parent=1 // pred_fallthru
      _
    // Predicated region
    $region10: #{tpu_custom_call.1} parent=1 // pred_check
      _
    $region11: #{tpu_custom_call.1} parent=1 // pred_check_branch
      %39 = sbr.rel (0) target = $region13
    $region12: #{tpu_custom_call.1} parent=1 // pred_region
      _
    $region13: #{tpu_custom_call.1} parent=1 // pred_fallthru
      _
    // Predicated region
    $region14: #{tpu_custom_call.1} parent=1 // pred_check
      _
    $region15: #{tpu_custom_call.1} parent=1 // pred_check_branch
      %41 = sbr.rel (0) target = $region17
    $region16: #{tpu_custom_call.1} parent=1 // pred_region
      %s43 = ssub.s32 1024, 1024
      %44 = vsyncadd [#allocation6], %s43
      %s45 = sshll.u32 [#allocation7], 4
      %s46 = int_to_ptr.vmem [resolvable:$true] %s45
      %51 = dma.hbm_to_vmem [thread:$0]  %s3, 1024, %s46, [#allocation6], 64, 64, 4
    $region17: #{tpu_custom_call.1} parent=1 // pred_fallthru
      _
    // Predicated region
    $region18: #{tpu_custom_call.1} parent=1 // pred_check
      _
    $region19: #{tpu_custom_call.1} parent=1 // pred_check_branch
      %53 = sbr.rel (0) target = $region21
    $region20: #{tpu_custom_call.1} parent=1 // pred_region
      _
    $region21: #{tpu_custom_call.1} parent=1 // pred_fallthru
      _
    // Predicated region
    $region22: #{tpu_custom_call.1} parent=1 // pred_check
      _
    $region23: #{tpu_custom_call.1} parent=1 // pred_check_branch
      %55 = sbr.rel (0) target = $region25
    $region24: #{tpu_custom_call.1} parent=1 // pred_region
      %s57 = ssub.s32 1024, 1024
      %58 = vsyncadd [#allocation9], %s57
      %s59 = sshll.u32 [#allocation8], 4
      %s60 = int_to_ptr.vmem [resolvable:$true] %s59
      %65 = dma.hbm_to_vmem [thread:$0]  %s5, 1024, %s60, [#allocation9], 64, 64, 4
    $region25: #{tpu_custom_call.1} parent=1 // pred_fallthru
      _
    // Predicated region
    $region26: #{tpu_custom_call.1} parent=1 // pred_check
      _
    $region27: #{tpu_custom_call.1} parent=1 // pred_check_branch
      %67 = sbr.rel (0) target = $region29
    $region28: #{tpu_custom_call.1} parent=1 // pred_region
      _
    $region29: #{tpu_custom_call.1} parent=1 // pred_fallthru
      _
    // Predicated region
    $region30: #{tpu_custom_call.1} parent=1 // pred_check
      _
    $region31: #{tpu_custom_call.1} parent=1 // pred_check_branch
      %69 = sbr.rel (0) target = $region33
    $region32: #{tpu_custom_call.1} parent=1 // pred_region
      %70 = dma.done [#allocation3], 128
    $region33: #{tpu_custom_call.1} parent=1 // pred_fallthru
      _
    // Predicated region
    $region34: #{tpu_custom_call.1} parent=1 // pred_check
      _
    $region35: #{tpu_custom_call.1} parent=1 // pred_check_branch
      %72 = sbr.rel (0) target = $region37
    $region36: #{tpu_custom_call.1} parent=1 // pred_region
      %73 = dma.done [#allocation6], 128
    $region37: #{tpu_custom_call.1} parent=1 // pred_fallthru
      _
    // Predicated region
    $region38: #{tpu_custom_call.1} parent=1 // pred_check
      _
    $region39: #{tpu_custom_call.1} parent=1 // pred_check_branch
      %75 = sbr.rel (0) target = $region41
    $region40: #{tpu_custom_call.1} parent=1 // pred_region
      %76 = dma.done [#allocation6], 1024
    $region41: #{tpu_custom_call.1} parent=1 // pred_fallthru
      _
    // Predicated region
    $region42: #{tpu_custom_call.1} parent=1 // pred_check
      _
    $region43: #{tpu_custom_call.1} parent=1 // pred_check_branch
      %78 = sbr.rel (0) target = $region45
    $region44: #{tpu_custom_call.1} parent=1 // pred_region
      %79 = dma.done [#allocation9], 1024
    $region45: #{tpu_custom_call.1} parent=1 // pred_fallthru
      _
    %v81 = vld [vmem:[#allocation2] sm:$0xff]
    %v82 = vpack.c.bf16 %v81, %v81
    %v83 = vld [vmem:[#allocation5] sm:$0xf]
    %v84 = vld [vmem:[#allocation5 + $0x4] sm:$0xf]
    %v85 = vld [vmem:[%s2] sm:$0x1]
    %v87 = vlaneseq
    %v88 = vshrl.u32 %v87, 7
    %v89 = vsub.s32 0, %v88
    %v90 = vrot.slane %v85, %v89
    %v94 = vunpack.c.l.b16 %v83
    %v95 = vunpack.c.l.b16 %v84
    %v96 = vpack.c.b16 %v95, %v94
    %vm98 = vcmask 130048
    %v100 = vsel %vm98, %v82, 0
    %102 = vmatprep.subr.bf16.mxu0 0
    %103 = vmatpush1.bf16.msra.mxu0 0
    %104 = vmatprep.subr.bf16.mxu0 0
    %105 = vmatpush1.bf16.msra.mxu0 0
    %106 = vmatprep.subr.bf16.mxu0 0
    %107 = vmatpush1.bf16.msra.mxu0 0
    %108 = vmatprep.subr.bf16.mxu0 0
    %109 = vmatpush1.bf16.msra.mxu0 0
    %110 = vmatprep.subr.bf16.mxu0 0
    %111 = vmatpush1.bf16.msra.mxu0 0
    %112 = vmatprep.subr.bf16.mxu0 0
    %113 = vmatpush1.bf16.msra.mxu0 0
    %114 = vmatprep.subr.bf16.mxu0 0
    %115 = vmatpush1.bf16.msra.mxu0 0
    %116 = vmatprep.subr.bf16.mxu0 0
    %117 = vmatpush1.bf16.msra.mxu0 %v96
    %118 = vmatprep.subr.bf16.mxu0 0
    %119 = vmatpush2.bf16.msra.mxu0 0
    %120 = vmatprep.subr.bf16.mxu0 0
    %121 = vmatpush2.bf16.msra.mxu0 0
    %122 = vmatprep.subr.bf16.mxu0 0
    %123 = vmatpush2.bf16.msra.mxu0 0
    %124 = vmatprep.subr.bf16.mxu0 0
    %125 = vmatpush2.bf16.msra.mxu0 0
    %126 = vmatprep.subr.bf16.mxu0 0
    %127 = vmatpush2.bf16.msra.mxu0 0
    %128 = vmatprep.subr.bf16.mxu0 0
    %129 = vmatpush2.bf16.msra.mxu0 0
    %130 = vmatprep.subr.bf16.mxu0 0
    %131 = vmatpush2.bf16.msra.mxu0 0
    %132 = vmatprep.subr.bf16.mxu0 0
    %133 = vmatpush2.bf16.msra.mxu0 0
    %134 = vmatprep.mubr.bf16.mxu0 0
    %135 = vmatmul.mubr.bf16.gmra.mxu0 %v100
    %v136 = vpop.f32.mrf.mxu0
    %v137 = vadd.f32 %v90, %v136
    %v138 = vpop.f32.mrf.mxu0
    %v139 = vpop.f32.mrf.mxu0
    %v140 = vpop.f32.mrf.mxu0
    %141 = vdwg.mxu0
    %v142 = vmax.f32 %v137, 0.0
    %v143 = vpack.c.bf16 %v142, %v142
    %v144 = vld [vmem:[#allocation7] sm:$0xf]
    %v145 = vld [vmem:[#allocation7 + $0x4] sm:$0xf]
    %v146 = vld [vmem:[#allocation7 + $0x8] sm:$0xf]
    %v147 = vld [vmem:[#allocation7 + $0xc] sm:$0xf]
    %v148 = vld [vmem:[#allocation7 + $0x10] sm:$0xf]
    %v149 = vld [vmem:[#allocation7 + $0x14] sm:$0xf]
    %v150 = vld [vmem:[#allocation7 + $0x18] sm:$0xf]
    %v151 = vld [vmem:[#allocation7 + $0x1c] sm:$0xf]
    %v152 = vld [vmem:[#allocation7 + $0x20] sm:$0xf]
    %v153 = vld [vmem:[#allocation7 + $0x24] sm:$0xf]
    %v154 = vld [vmem:[#allocation7 + $0x28] sm:$0xf]
    %v155 = vld [vmem:[#allocation7 + $0x2c] sm:$0xf]
    %v156 = vld [vmem:[#allocation7 + $0x30] sm:$0xf]
    %v157 = vld [vmem:[#allocation7 + $0x34] sm:$0xf]
    %v158 = vld [vmem:[#allocation7 + $0x38] sm:$0xf]
    %v159 = vld [vmem:[#allocation7 + $0x3c] sm:$0xf]
    %v160 = vld [vmem:[%s4] sm:$0x1]
    %v162 = vlaneseq
    %v163 = vshrl.u32 %v162, 7
    %v164 = vsub.s32 0, %v163
    %v165 = vrot.slane %v160, %v164
    %v183 = vunpack.c.l.b16 %v144
    %v184 = vunpack.c.l.b16 %v145
    %v185 = vunpack.c.l.b16 %v146
    %v186 = vunpack.c.l.b16 %v147
    %v187 = vunpack.c.l.b16 %v148
    %v188 = vunpack.c.l.b16 %v149
    %v189 = vunpack.c.l.b16 %v150
    %v190 = vunpack.c.l.b16 %v151
    %v191 = vunpack.c.l.b16 %v152
    %v192 = vunpack.c.l.b16 %v153
    %v193 = vunpack.c.l.b16 %v154
    %v194 = vunpack.c.l.b16 %v155
    %v195 = vunpack.c.l.b16 %v156
    %v196 = vunpack.c.l.b16 %v157
    %v197 = vunpack.c.l.b16 %v158
    %v198 = vunpack.c.l.b16 %v159
    %v199 = vpack.c.b16 %v184, %v183
    %v200 = vpack.c.b16 %v186, %v185
    %v201 = vpack.c.b16 %v188, %v187
    %v202 = vpack.c.b16 %v190, %v189
    %v203 = vpack.c.b16 %v192, %v191
    %v204 = vpack.c.b16 %v194, %v193
    %v205 = vpack.c.b16 %v196, %v195
    %v206 = vpack.c.b16 %v198, %v197
    %215 = vmatprep.subr.bf16.mxu0 0
    %216 = vmatpush1.bf16.msra.mxu0 %v206
    %217 = vmatprep.subr.bf16.mxu0 0
    %218 = vmatpush1.bf16.msra.mxu0 %v205
    %219 = vmatprep.subr.bf16.mxu0 0
    %220 = vmatpush1.bf16.msra.mxu0 %v204
    %221 = vmatprep.subr.bf16.mxu0 0
    %222 = vmatpush1.bf16.msra.mxu0 %v203
    %223 = vmatprep.subr.bf16.mxu0 0
    %224 = vmatpush1.bf16.msra.mxu0 %v202
    %225 = vmatprep.subr.bf16.mxu0 0
    %226 = vmatpush1.bf16.msra.mxu0 %v201
    %227 = vmatprep.subr.bf16.mxu0 0
    %228 = vmatpush1.bf16.msra.mxu0 %v200
    %229 = vmatprep.subr.bf16.mxu0 0
    %230 = vmatpush1.bf16.msra.mxu0 %v199
    %231 = vmatprep.subr.bf16.mxu0 0
    %232 = vmatpush2.bf16.msra.mxu0 0
    %233 = vmatprep.subr.bf16.mxu0 0
    %234 = vmatpush2.bf16.msra.mxu0 0
    %235 = vmatprep.subr.bf16.mxu0 0
    %236 = vmatpush2.bf16.msra.mxu0 0
    %237 = vmatprep.subr.bf16.mxu0 0
    %238 = vmatpush2.bf16.msra.mxu0 0
    %239 = vmatprep.subr.bf16.mxu0 0
    %240 = vmatpush2.bf16.msra.mxu0 0
    %241 = vmatprep.subr.bf16.mxu0 0
    %242 = vmatpush2.bf16.msra.mxu0 0
    %243 = vmatprep.subr.bf16.mxu0 0
    %244 = vmatpush2.bf16.msra.mxu0 0
    %245 = vmatprep.subr.bf16.mxu0 0
    %246 = vmatpush2.bf16.msra.mxu0 0
    %247 = vmatprep.mubr.bf16.mxu0 0
    %248 = vmatmul.mubr.bf16.gmra.mxu0 %v143
    %v249 = vpop.f32.mrf.mxu0
    %v250 = vadd.f32 %v165, %v249
    %v251 = vpop.f32.mrf.mxu0
    %v252 = vpop.f32.mrf.mxu0
    %v253 = vpop.f32.mrf.mxu0
    %254 = vdwg.mxu0
    %v255 = vmax.f32 %v250, 0.0
    %v256 = vpack.c.bf16 %v255, %v255
    %v257 = vld [vmem:[#allocation8] sm:$0xf]
    %v258 = vld [vmem:[#allocation8 + $0x4] sm:$0xf]
    %v259 = vld [vmem:[#allocation8 + $0x8] sm:$0xf]
    %v260 = vld [vmem:[#allocation8 + $0xc] sm:$0xf]
    %v261 = vld [vmem:[#allocation8 + $0x10] sm:$0xf]
    %v262 = vld [vmem:[#allocation8 + $0x14] sm:$0xf]
    %v263 = vld [vmem:[#allocation8 + $0x18] sm:$0xf]
    %v264 = vld [vmem:[#allocation8 + $0x1c] sm:$0xf]
    %v265 = vld [vmem:[#allocation8 + $0x20] sm:$0xf]
    %v266 = vld [vmem:[#allocation8 + $0x24] sm:$0xf]
    %v267 = vld [vmem:[#allocation8 + $0x28] sm:$0xf]
    %v268 = vld [vmem:[#allocation8 + $0x2c] sm:$0xf]
    %v269 = vld [vmem:[#allocation8 + $0x30] sm:$0xf]
    %v270 = vld [vmem:[#allocation8 + $0x34] sm:$0xf]
    %v271 = vld [vmem:[#allocation8 + $0x38] sm:$0xf]
    %v272 = vld [vmem:[#allocation8 + $0x3c] sm:$0xf]
    %v273 = vld [vmem:[%s6] sm:$0x1]
    %v275 = vlaneseq
    %v276 = vshrl.u32 %v275, 7
    %v277 = vsub.s32 0, %v276
    %v278 = vrot.slane %v273, %v277
    %v296 = vunpack.c.l.b16 %v257
    %v297 = vunpack.c.l.b16 %v258
    %v298 = vunpack.c.l.b16 %v259
    %v299 = vunpack.c.l.b16 %v260
    %v300 = vunpack.c.l.b16 %v261
    %v301 = vunpack.c.l.b16 %v262
    %v302 = vunpack.c.l.b16 %v263
    %v303 = vunpack.c.l.b16 %v264
    %v304 = vunpack.c.l.b16 %v265
    %v305 = vunpack.c.l.b16 %v266
    %v306 = vunpack.c.l.b16 %v267
    %v307 = vunpack.c.l.b16 %v268
    %v308 = vunpack.c.l.b16 %v269
    %v309 = vunpack.c.l.b16 %v270
    %v310 = vunpack.c.l.b16 %v271
    %v311 = vunpack.c.l.b16 %v272
    %v312 = vpack.c.b16 %v297, %v296
    %v313 = vpack.c.b16 %v299, %v298
    %v314 = vpack.c.b16 %v301, %v300
    %v315 = vpack.c.b16 %v303, %v302
    %v316 = vpack.c.b16 %v305, %v304
    %v317 = vpack.c.b16 %v307, %v306
    %v318 = vpack.c.b16 %v309, %v308
    %v319 = vpack.c.b16 %v311, %v310
    %328 = vmatprep.subr.bf16.mxu0 0
    %329 = vmatpush1.bf16.msra.mxu0 %v319
    %330 = vmatprep.subr.bf16.mxu0 0
    %331 = vmatpush1.bf16.msra.mxu0 %v318
    %332 = vmatprep.subr.bf16.mxu0 0
    %333 = vmatpush1.bf16.msra.mxu0 %v317
    %334 = vmatprep.subr.bf16.mxu0 0
    %335 = vmatpush1.bf16.msra.mxu0 %v316
    %336 = vmatprep.subr.bf16.mxu0 0
    %337 = vmatpush1.bf16.msra.mxu0 %v315
    %338 = vmatprep.subr.bf16.mxu0 0
    %339 = vmatpush1.bf16.msra.mxu0 %v314
    %340 = vmatprep.subr.bf16.mxu0 0
    %341 = vmatpush1.bf16.msra.mxu0 %v313
    %342 = vmatprep.subr.bf16.mxu0 0
    %343 = vmatpush1.bf16.msra.mxu0 %v312
    %344 = vmatprep.subr.bf16.mxu0 0
    %345 = vmatpush2.bf16.msra.mxu0 0
    %346 = vmatprep.subr.bf16.mxu0 0
    %347 = vmatpush2.bf16.msra.mxu0 0
    %348 = vmatprep.subr.bf16.mxu0 0
    %349 = vmatpush2.bf16.msra.mxu0 0
    %350 = vmatprep.subr.bf16.mxu0 0
    %351 = vmatpush2.bf16.msra.mxu0 0
    %352 = vmatprep.subr.bf16.mxu0 0
    %353 = vmatpush2.bf16.msra.mxu0 0
    %354 = vmatprep.subr.bf16.mxu0 0
    %355 = vmatpush2.bf16.msra.mxu0 0
    %356 = vmatprep.subr.bf16.mxu0 0
    %357 = vmatpush2.bf16.msra.mxu0 0
    %358 = vmatprep.subr.bf16.mxu0 0
    %359 = vmatpush2.bf16.msra.mxu0 0
    %360 = vmatprep.mubr.bf16.mxu0 0
    %361 = vmatmul.mubr.bf16.gmra.mxu0 %v256
    %v362 = vpop.f32.mrf.mxu0
    %v363 = vadd.f32 %v278, %v362
    %v364 = vpop.f32.mrf.mxu0
    %v365 = vpop.f32.mrf.mxu0
    %v366 = vpop.f32.mrf.mxu0
    %367 = vdwg.mxu0
    %368 = vst [vmem:[#allocation10] sm:$0xff] %v363
    // Predicated region
    $region46: #{tpu_custom_call.1} parent=1 // pred_check
      _
    $region47: #{tpu_custom_call.1} parent=1 // pred_check_branch
      %370 = sbr.rel (0) target = $region49
    $region48: #{tpu_custom_call.1} parent=1 // pred_region
      %s372 = ssub.s32 128, 128
      %373 = vsyncadd [#allocation4], %s372
      %s375 = sshll.u32 [#allocation10], 4
      %s376 = int_to_ptr.vmem [resolvable:$true] %s375
      %378 = dma.vmem_to_hbm [thread:$0]  %s376, 128, %s7, [#allocation4]
    $region49: #{tpu_custom_call.1} parent=1 // pred_fallthru
      _
    // Predicated region
    $region50: #{tpu_custom_call.1} parent=1 // pred_check
      _
    $region51: #{tpu_custom_call.1} parent=1 // pred_check_branch
      %380 = sbr.rel (0) target = $region53
    $region52: #{tpu_custom_call.1} parent=1 // pred_region
      %381 = dma.done [#allocation4], 128
    $region53: #{tpu_custom_call.1} parent=1 // pred_fallthru
      _
    %382 = vsyncpa [#allocation3], 1
    %383 = vsyncpa [#allocation6], 1
    %384 = vsyncpa [#allocation9], 1
    %385 = vsyncpa [#allocation4], 1

</llo_original>
